<compile_context>
chip_gen: v5e
topology: v5e:2x2
jax: 0.10.0
libtpu: 0.0.40
codegen_flags: <defaults>
</compile_context>

<pallas_src>
import functools

import jax
import jax.numpy as jnp
import numpy as np
from jax.experimental import pallas as pl
from jax.experimental.pallas import tpu as pltpu

EPS = 1e-5          # nn.BatchNorm2d default eps
LANE = 128          # TPU lane width


def _round_up(x, m):
    return (x + m - 1) // m * m


def _pick_row_tile(m, target=512):
    """Largest divisor of m that is a multiple of 16 and <= target."""
    best = None
    t = 16
    while t <= min(m, target):
        if m % t == 0:
            best = t
        t += 16
    if best is None:
        # TODO(synk): pad M + mask stats for awkward shapes instead of TM=m.
        return m
    return best


def _pick_image_tile(n, max_nb=4):
    """Images per 3x3 grid step (divisor of n, keep >=2 grid steps if possible)."""
    best = 1
    for cand in range(1, min(n, max_nb) + 1):
        if n % cand == 0 and n // cand >= 2:
            best = cand
    return best


def _nbytes(shape, dtype):
    n = 1
    for d in shape:
        n *= int(d)
    return n * np.dtype(dtype).itemsize


def _vmem_limit(pipeline_bytes, scratch_bytes=0):
    # 2x for double-buffered pipeline blocks + persistent scratch + headroom.
    # Derived (not a fixed 48 MiB) so it stays safe on v7x's 64 MiB VMEM.
    return int(min(2 * pipeline_bytes + scratch_bytes + (16 << 20), 48 << 20))


# --------------------------------------------------------------------------
# In-kernel fold of per-tile (sum, sumsq) partials into BN scale/shift.
# --------------------------------------------------------------------------
def _fold_scale_shift(s_part, ss_part, gamma, beta, inv_count):
    s = jnp.sum(s_part, axis=0)            # (T,1,C) -> (1,C)
    ss = jnp.sum(ss_part, axis=0)
    mu = s * inv_count
    # TODO(synk): Chan's parallel (mean, M2) combine would be more robust than
    # E[x^2]-E[x]^2 for very large M; fine in f32 at these sizes.
    var = jnp.maximum(ss * inv_count - mu * mu, 0.0)
    inv = jax.lax.rsqrt(var + EPS)
    scale = gamma * inv
    shift = beta - mu * scale
    return scale, shift


# --------------------------------------------------------------------------
# Kernel 1: 1x1 conv (matmul) + per-tile BN partial stats
# --------------------------------------------------------------------------
def _conv1x1_stats_kernel(x_ref, w_ref, y_ref, sum_ref, ssq_ref):
    y = jnp.dot(x_ref[...], w_ref[...], preferred_element_type=jnp.float32)
    y_bf = y.astype(y_ref.dtype)
    y_ref[...] = y_bf
    ys = y_bf.astype(jnp.float32)          # stats from what the next stage sees
    sum_ref[0] = jnp.sum(ys, axis=0, keepdims=True)
    ssq_ref[0] = jnp.sum(ys * ys, axis=0, keepdims=True)


# --------------------------------------------------------------------------
# Kernel 2: BN+ReLU (folded in-kernel) -> 1x1 conv -> per-tile partial stats
# --------------------------------------------------------------------------
def _bn_relu_conv1x1_stats_kernel(x_ref, w_ref, s_ref, ss_ref, g_ref, b_ref,
                                  y_ref, sum_ref, ssq_ref, *, inv_count):
    scale, shift = _fold_scale_shift(s_ref[...], ss_ref[...], g_ref[...],
                                     b_ref[...], inv_count)
    z = jnp.maximum(x_ref[...].astype(jnp.float32) * scale + shift, 0.0)
    y = jnp.dot(z.astype(jnp.bfloat16), w_ref[...],
                preferred_element_type=jnp.float32)
    y_bf = y.astype(y_ref.dtype)
    y_ref[...] = y_bf
    ys = y_bf.astype(jnp.float32)
    sum_ref[0] = jnp.sum(ys, axis=0, keepdims=True)
    ssq_ref[0] = jnp.sum(ys * ys, axis=0, keepdims=True)


# --------------------------------------------------------------------------
# Kernel 3: BN1+ReLU -> 3x3 conv as ONE im2col matmul (K = 9*C) -> stats
# --------------------------------------------------------------------------
def _bn_relu_conv3x3_stats_kernel(y1_ref, w2_ref, s_ref, ss_ref, g_ref, b_ref,
                                  y2_ref, sum_ref, ssq_ref, slab_ref, lhs_ref,
                                  *, H, W, Nb, inv_count):
    C = y1_ref.shape[-1]
    HW = H * W
    scale, shift = _fold_scale_shift(s_ref[...], ss_ref[...], g_ref[...],
                                     b_ref[...], inv_count)
    scale3 = scale.reshape(1, 1, C)
    shift3 = shift.reshape(1, 1, C)

    # Zero-filled (H+2, W+2, C) slab in VMEM; borders stay zero, interior is
    # fully overwritten per image (spatial zero-padding applies post-ReLU).
    slab_ref[...] = jnp.zeros_like(slab_ref)

    for b in range(Nb):
        xb = y1_ref[b].astype(jnp.float32)                       # (H, W, C)
        zb = jnp.maximum(xb * scale3 + shift3, 0.0).astype(jnp.bfloat16)
        slab_ref[1:H + 1, 1:W + 1, :] = zb
        slab = slab_ref[...]                                     # (H+2, W+2, C)
        # Pack the nine shifted taps into one im2col LHS -> single matmul.
        for dh in range(3):
            for dw in range(3):
                k = dh * 3 + dw
                patch = slab[dh:dh + H, dw:dw + W, :].reshape(HW, C)
                lhs_ref[b * HW:(b + 1) * HW, k * C:(k + 1) * C] = patch

    y = jnp.dot(lhs_ref[...], w2_ref[...], preferred_element_type=jnp.float32)
    y_bf = y.astype(y2_ref.dtype)
    y2_ref[...] = y_bf
    ys = y_bf.astype(jnp.float32)
    sum_ref[0] = jnp.sum(ys, axis=0, keepdims=True)
    ssq_ref[0] = jnp.sum(ys * ys, axis=0, keepdims=True)


# --------------------------------------------------------------------------
# Kernel 4: BN3 (folded in-kernel) + residual add + ReLU
# --------------------------------------------------------------------------
def _bn_residual_relu_kernel(y_ref, s_ref, ss_ref, g_ref, b_ref, idn_ref,
                             o_ref, *, inv_count):
    scale, shift = _fold_scale_shift(s_ref[...], ss_ref[...], g_ref[...],
                                     b_ref[...], inv_count)
    y = y_ref[...].astype(jnp.float32) * scale + shift
    y = y + idn_ref[...].astype(jnp.float32)
    o_ref[...] = jnp.maximum(y, 0.0).astype(o_ref.dtype)


# --------------------------------------------------------------------------
# Stage wrappers
# --------------------------------------------------------------------------
def _conv1x1_stage(x, w, *, tm):
    m, cin = x.shape
    cout = w.shape[1]
    nt = m // tm
    pipe = (_nbytes((tm, cin), jnp.bfloat16) + _nbytes((cin, cout), jnp.bfloat16)
            + _nbytes((tm, cout), jnp.bfloat16)
            + 2 * _nbytes((1, 1, cout), jnp.float32))
    return pl.pallas_call(
        _conv1x1_stats_kernel,
        grid=(nt,),
        in_specs=[pl.BlockSpec((tm, cin), lambda i: (i, 0)),
                  pl.BlockSpec((cin, cout), lambda i: (0, 0))],
        out_specs=[pl.BlockSpec((tm, cout), lambda i: (i, 0)),
                   pl.BlockSpec((1, 1, cout), lambda i: (i, 0, 0)),
                   pl.BlockSpec((1, 1, cout), lambda i: (i, 0, 0))],
        out_shape=[jax.ShapeDtypeStruct((m, cout), jnp.bfloat16),
                   jax.ShapeDtypeStruct((nt, 1, cout), jnp.float32),
                   jax.ShapeDtypeStruct((nt, 1, cout), jnp.float32)],
        compiler_params=pltpu.CompilerParams(
            dimension_semantics=("parallel",),
            vmem_limit_bytes=_vmem_limit(pipe)),
        cost_estimate=pl.CostEstimate(
            flops=2 * m * cin * cout, transcendentals=0,
            bytes_accessed=2 * (m * cin + m * cout + cin * cout)),
    )(x, w)


def _bn_conv1x1_stage(y_in, w, s, ss, g, be, *, tm, inv_count):
    m, cin = y_in.shape
    cout = w.shape[1]
    nt = m // tm
    t_in = s.shape[0]
    kernel = functools.partial(_bn_relu_conv1x1_stats_kernel, inv_count=inv_count)
    pipe = (_nbytes((tm, cin), jnp.bfloat16) + _nbytes((cin, cout), jnp.bfloat16)
            + 2 * _nbytes((t_in, 1, cin), jnp.float32)
            + 2 * _nbytes((1, cin), jnp.float32)
            + _nbytes((tm, cout), jnp.bfloat16)
            + 2 * _nbytes((1, 1, cout), jnp.float32))
    return pl.pallas_call(
        kernel,
        grid=(nt,),
        in_specs=[pl.BlockSpec((tm, cin), lambda i: (i, 0)),
                  pl.BlockSpec((cin, cout), lambda i: (0, 0)),
                  pl.BlockSpec((t_in, 1, cin), lambda i: (0, 0, 0)),
                  pl.BlockSpec((t_in, 1, cin), lambda i: (0, 0, 0)),
                  pl.BlockSpec((1, cin), lambda i: (0, 0)),
                  pl.BlockSpec((1, cin), lambda i: (0, 0))],
        out_specs=[pl.BlockSpec((tm, cout), lambda i: (i, 0)),
                   pl.BlockSpec((1, 1, cout), lambda i: (i, 0, 0)),
                   pl.BlockSpec((1, 1, cout), lambda i: (i, 0, 0))],
        out_shape=[jax.ShapeDtypeStruct((m, cout), jnp.bfloat16),
                   jax.ShapeDtypeStruct((nt, 1, cout), jnp.float32),
                   jax.ShapeDtypeStruct((nt, 1, cout), jnp.float32)],
        compiler_params=pltpu.CompilerParams(
            dimension_semantics=("parallel",),
            vmem_limit_bytes=_vmem_limit(pipe)),
        cost_estimate=pl.CostEstimate(
            flops=2 * m * cin * cout, transcendentals=0,
            bytes_accessed=2 * (m * cin + m * cout + cin * cout)),
    )(y_in, w, s, ss, g, be)


def _conv3x3_stage(y1, w2, s1, ss1, g1, be1, *, N, H, W, nb, inv_count):
    c = y1.shape[-1]
    HW = H * W
    ng = N // nb
    t_in = s1.shape[0]
    kernel = functools.partial(_bn_relu_conv3x3_stats_kernel,
                               H=H, W=W, Nb=nb, inv_count=inv_count)
    y1_4d = y1.reshape(N, H, W, c)        # layout-preserving (free) reshape
    pipe = (_nbytes((nb, H, W, c), jnp.bfloat16)
            + _nbytes((9 * c, c), jnp.bfloat16)
            + 2 * _nbytes((t_in, 1, c), jnp.float32)
            + 2 * _nbytes((1, c), jnp.float32)
            + _nbytes((nb * HW, c), jnp.bfloat16)
            + 2 * _nbytes((1, 1, c), jnp.float32))
    scratch = (_nbytes((H + 2, W + 2, c), jnp.bfloat16)
               + _nbytes((nb * HW, 9 * c), jnp.bfloat16))
    return pl.pallas_call(
        kernel,
        grid=(ng,),
        in_specs=[pl.BlockSpec((nb, H, W, c), lambda n: (n, 0, 0, 0)),
                  pl.BlockSpec((9 * c, c), lambda n: (0, 0)),
                  pl.BlockSpec((t_in, 1, c), lambda n: (0, 0, 0)),
                  pl.BlockSpec((t_in, 1, c), lambda n: (0, 0, 0)),
                  pl.BlockSpec((1, c), lambda n: (0, 0)),
                  pl.BlockSpec((1, c), lambda n: (0, 0))],
        out_specs=[pl.BlockSpec((nb * HW, c), lambda n: (n, 0)),
                   pl.BlockSpec((1, 1, c), lambda n: (n, 0, 0)),
                   pl.BlockSpec((1, 1, c), lambda n: (n, 0, 0))],
        out_shape=[jax.ShapeDtypeStruct((N * HW, c), jnp.bfloat16),
                   jax.ShapeDtypeStruct((ng, 1, c), jnp.float32),
                   jax.ShapeDtypeStruct((ng, 1, c), jnp.float32)],
        scratch_shapes=[pltpu.VMEM((H + 2, W + 2, c), jnp.bfloat16),
                        pltpu.VMEM((nb * HW, 9 * c), jnp.bfloat16)],
        compiler_params=pltpu.CompilerParams(
            dimension_semantics=("parallel",),
            vmem_limit_bytes=_vmem_limit(pipe, scratch)),
        cost_estimate=pl.CostEstimate(
            flops=2 * N * HW * 9 * c * c, transcendentals=0,
            bytes_accessed=2 * (2 * N * HW * c + 9 * c * c)),
    )(y1_4d, w2, s1, ss1, g1, be1)


def _finalize_stage(y3, s3, ss3, g3, be3, idn, *, tm, inv_count):
    m, c = y3.shape
    nt = m // tm
    t_in = s3.shape[0]
    kernel = functools.partial(_bn_residual_relu_kernel, inv_count=inv_count)
    pipe = (3 * _nbytes((tm, c), jnp.bfloat16)
            + 2 * _nbytes((t_in, 1, c), jnp.float32)
            + 2 * _nbytes((1, c), jnp.float32))
    return pl.pallas_call(
        kernel,
        grid=(nt,),
        in_specs=[pl.BlockSpec((tm, c), lambda i: (i, 0)),
                  pl.BlockSpec((t_in, 1, c), lambda i: (0, 0, 0)),
                  pl.BlockSpec((t_in, 1, c), lambda i: (0, 0, 0)),
                  pl.BlockSpec((1, c), lambda i: (0, 0)),
                  pl.BlockSpec((1, c), lambda i: (0, 0)),
                  pl.BlockSpec((tm, c), lambda i: (i, 0))],
        out_specs=pl.BlockSpec((tm, c), lambda i: (i, 0)),
        out_shape=jax.ShapeDtypeStruct((m, c), jnp.bfloat16),
        compiler_params=pltpu.CompilerParams(
            dimension_semantics=("parallel",),
            vmem_limit_bytes=_vmem_limit(pipe)),
        cost_estimate=pl.CostEstimate(
            flops=5 * m * c, transcendentals=0,
            bytes_accessed=6 * m * c),
    )(y3, s3, ss3, g3, be3, idn)


# --------------------------------------------------------------------------
# Bottleneck forward (identity shortcut)
# --------------------------------------------------------------------------
def bottleneck_forward(x_nchw, params, stride=1):
    assert stride == 1, "identity shortcut requires stride=1 (downsample: TODO)"
    N, Cin, H, W = x_nchw.shape
    Cmid = params["w1"].shape[1]
    Cexp = params["w3"].shape[1]
    assert Cin == Cexp, "identity shortcut requires in_channels == expansion*planes"
    M = N * H * W
    assert M % 16 == 0

    Cin_p = _round_up(Cin, LANE)
    Cmid_p = _round_up(Cmid, LANE)
    Cexp_p = _round_up(Cexp, LANE)
    TM = _pick_row_tile(M, target=512)     # try target=1024 on v6e
    NB = _pick_image_tile(N, max_nb=4)
    inv_count = 1.0 / M

    f32, bf16 = jnp.float32, jnp.bfloat16

    def padc(a, cols):
        return jnp.pad(a, ((0, 0), (0, cols - a.shape[1]))).astype(f32)

    # Layout glue (single fused pass): NCHW -> NHWC, flatten, channel-pad to
    # 128 lanes, bf16.  Also serves as the residual identity.
    x_flat = jnp.pad(
        jnp.transpose(x_nchw, (0, 2, 3, 1)).reshape(M, Cin),
        ((0, 0), (0, Cin_p - Cin))).astype(bf16)

    w1 = jnp.pad(params["w1"], ((0, Cin_p - Cin), (0, Cmid_p - Cmid))).astype(bf16)
    w2 = jnp.pad(params["w2"],
                 ((0, 0), (0, 0), (0, Cmid_p - Cmid), (0, Cmid_p - Cmid)))
    w2 = w2.reshape(9 * Cmid_p, Cmid_p).astype(bf16)   # im2col weight, K=(dh,dw,cin)
    w3 = jnp.pad(params["w3"], ((0, Cmid_p - Cmid), (0, Cexp_p - Cexp))).astype(bf16)

    g1, be1 = padc(params["g1"], Cmid_p), padc(params["be1"], Cmid_p)
    g2, be2 = padc(params["g2"], Cmid_p), padc(params["be2"], Cmid_p)
    g3, be3 = padc(params["g3"], Cexp_p), padc(params["be3"], Cexp_p)

    # stage 1: conv1 (1x1) + per-tile BN1 partial stats
    y1, s1, ss1 = _conv1x1_stage(x_flat, w1, tm=TM)
    # stage 2: BN1+ReLU -> conv2 (3x3 via single in-VMEM im2col matmul) + BN2 partials
    y2, s2, ss2 = _conv3x3_stage(y1, w2, s1, ss1, g1, be1,
                                 N=N, H=H, W=W, nb=NB, inv_count=inv_count)
    # stage 3: BN2+ReLU -> conv3 (1x1) + BN3 partials
    y3, s3, ss3 = _bn_conv1x1_stage(y2, w3, s2, ss2, g2, be2,
                                    tm=TM, inv_count=inv_count)
    # stage 4: BN3 + residual add + ReLU (bf16 writeback)
    out_flat = _finalize_stage(y3, s3, ss3, g3, be3, x_flat,
                               tm=TM, inv_count=inv_count)

    out = out_flat.reshape(N, H, W, Cexp_p)[:, :, :, :Cexp]
    return jnp.transpose(out, (0, 3, 1, 2)).astype(f32)   # back to NCHW


# --------------------------------------------------------- pure-JAX reference
def reference_forward(x_nchw, params):
    x = jnp.transpose(x_nchw, (0, 2, 3, 1)).astype(jnp.float32)

    def bn(y, g, b):
        mu = y.mean(axis=(0, 1, 2), keepdims=True)
        var = jnp.square(y - mu).mean(axis=(0, 1, 2), keepdims=True)
        return (y - mu) * jax.lax.rsqrt(var + EPS) * g.reshape(1, 1, 1, -1) \
               + b.reshape(1, 1, 1, -1)

    y = jnp.einsum("nhwc,cd->nhwd", x, params["w1"])
    y = jax.nn.relu(bn(y, params["g1"], params["be1"]))
    y = jax.lax.conv_general_dilated(
        y, params["w2"], (1, 1), ((1, 1), (1, 1)),
        dimension_numbers=("NHWC", "HWIO", "NHWC"))
    y = jax.nn.relu(bn(y, params["g2"], params["be2"]))
    y = jnp.einsum("nhwc,cd->nhwd", y, params["w3"])
    y = bn(y, params["g3"], params["be3"])
    y = jax.nn.relu(y + x)
    return jnp.transpose(y, (0, 3, 1, 2))


if __name__ == "__main__":
    # Bottleneck(in_channels=64, out_channels=16) identity-shortcut block
    N, H, W = 4, 16, 16
    in_channels, out_channels, expansion = 64, 16, 4
    Cexp = out_channels * expansion      # 64 == in_channels

    key = jax.random.PRNGKey(0)
    ks = jax.random.split(key, 10)
    x = jax.random.normal(ks[0], (N, in_channels, H, W), jnp.float32)

    params = {
        # conv1: 1x1 (Cin -> Cmid), bias=False
        "w1": 0.2 * jax.random.normal(ks[1], (in_channels, out_channels), jnp.float32),
        "g1": 1.0 + 0.1 * jax.random.normal(ks[2], (1, out_channels), jnp.float32),
        "be1": 0.1 * jax.random.normal(ks[3], (1, out_channels), jnp.float32),
        # conv2: 3x3 (Cmid -> Cmid), HWIO, bias=False
        "w2": 0.2 * jax.random.normal(ks[4], (3, 3, out_channels, out_channels), jnp.float32),
        "g2": 1.0 + 0.1 * jax.random.normal(ks[5], (1, out_channels), jnp.float32),
        "be2": 0.1 * jax.random.normal(ks[6], (1, out_channels), jnp.float32),
        # conv3: 1x1 (Cmid -> Cexp), bias=False
        "w3": 0.2 * jax.random.normal(ks[7], (out_channels, Cexp), jnp.float32),
        "g3": 1.0 + 0.1 * jax.random.normal(ks[8], (1, Cexp), jnp.float32),
        "be3": 0.1 * jax.random.normal(ks[9], (1, Cexp), jnp.float32),
    }

    out = jax.block_until_ready(bottleneck_forward(x, params, stride=1))
    ref = jax.block_until_ready(reference_forward(x, params))

    # Pallas path uses bf16 MXU operands / bf16 HBM intermediates; reference is
    # pure f32, so compare with a bf16-appropriate tolerance.
    np.testing.assert_allclose(np.asarray(out), np.asarray(ref),
                               atol=1e-1, rtol=1e-1)
    print("KERNEL_OK")
</pallas_src>

<mosaic_0001>
module attributes {stable_mosaic.version = 11 : i64} {
  func.func @_conv1x1_stats_kernel(%arg0: i32, %arg1: memref<512x128xbf16, #tpu.memory_space<vmem>>, %arg2: memref<128x128xbf16, #tpu.memory_space<vmem>>, %arg3: memref<512x128xbf16, #tpu.memory_space<vmem>>, %arg4: memref<1x1x128xf32, #tpu.memory_space<vmem>>, %arg5: memref<1x1x128xf32, #tpu.memory_space<vmem>>) attributes {dimension_semantics = [#tpu.dimension_semantics<parallel>], iteration_bounds = array<i64: 2>, scalar_prefetch = 0 : i64, scratch_operands = 0 : i64, tpu.core_type = #tpu.core_type<tc>, window_params = [{transform_indices = @transform_0, window_bounds = array<i64: 512, 128>}, {pipeline_mode = #tpu.pipeline_mode<synchronous>, transform_indices = @transform_1, window_bounds = array<i64: 128, 128>}, {transform_indices = @transform_2, window_bounds = array<i64: 512, 128>}, {transform_indices = @transform_3, window_bounds = array<i64: 1, 1, 128>}, {transform_indices = @transform_4, window_bounds = array<i64: 1, 1, 128>}]} {
    %c0 = arith.constant 0 : index
    %c0_0 = arith.constant 0 : index
    %0 = vector.load %arg1[%c0, %c0_0] : memref<512x128xbf16, #tpu.memory_space<vmem>>, vector<512x128xbf16>
    %c0_1 = arith.constant 0 : index
    %c0_2 = arith.constant 0 : index
    %1 = vector.load %arg2[%c0_1, %c0_2] : memref<128x128xbf16, #tpu.memory_space<vmem>>, vector<128x128xbf16>
    %cst = arith.constant dense<0.000000e+00> : vector<512x128xf32>
    %2 = tpu.matmul %0, %1, %cst {dimension_numbers = #tpu.dot_dimension_numbers<[1], [0], [0], [1], [0, 0, 1, 1], [], []>} : vector<512x128xbf16>, vector<128x128xbf16>, vector<512x128xf32> -> vector<512x128xf32>
    %3 = arith.truncf %2 : vector<512x128xf32> to vector<512x128xbf16>
    %c0_3 = arith.constant 0 : index
    %c0_4 = arith.constant 0 : index
    %4 = vector.load %arg3[%c0_3, %c0_4] : memref<512x128xbf16, #tpu.memory_space<vmem>>, vector<512x128xbf16>
    tpu.vector_store %arg3[%c0_3, %c0_4], %3 {strides = array<i32>} : memref<512x128xbf16, #tpu.memory_space<vmem>>, vector<512x128xbf16>,
    %5 = arith.extf %3 : vector<512x128xbf16> to vector<512x128xf32>
    %cst_5 = arith.constant dense<0.000000e+00> : vector<128xf32>
    %6 = vector.multi_reduction <add>, %5, %cst_5 [0] : vector<512x128xf32> to vector<128xf32>
    %7 = vector.shape_cast %6 : vector<128xf32> to vector<1x128xf32>
    %c0_6 = arith.constant 0 : index
    %c0_7 = arith.constant 0 : index
    %c0_8 = arith.constant 0 : index
    %8 = vector.load %arg4[%c0_6, %c0_7, %c0_8] : memref<1x1x128xf32, #tpu.memory_space<vmem>>, vector<1x1x128xf32>
    %9 = vector.shape_cast %8 : vector<1x1x128xf32> to vector<1x128xf32>
    %10 = vector.shape_cast %7 : vector<1x128xf32> to vector<1x1x128xf32>
    tpu.vector_store %arg4[%c0_6, %c0_7, %c0_8], %10 {strides = array<i32>} : memref<1x1x128xf32, #tpu.memory_space<vmem>>, vector<1x1x128xf32>,
    %11 = arith.mulf %5, %5 : vector<512x128xf32>
    %cst_9 = arith.constant dense<0.000000e+00> : vector<128xf32>
    %12 = vector.multi_reduction <add>, %11, %cst_9 [0] : vector<512x128xf32> to vector<128xf32>
    %13 = vector.shape_cast %12 : vector<128xf32> to vector<1x128xf32>
    %c0_10 = arith.constant 0 : index
    %c0_11 = arith.constant 0 : index
    %c0_12 = arith.constant 0 : index
    %14 = vector.load %arg5[%c0_10, %c0_11, %c0_12] : memref<1x1x128xf32, #tpu.memory_space<vmem>>, vector<1x1x128xf32>
    %15 = vector.shape_cast %14 : vector<1x1x128xf32> to vector<1x128xf32>
    %16 = vector.shape_cast %13 : vector<1x128xf32> to vector<1x1x128xf32>
    tpu.vector_store %arg5[%c0_10, %c0_11, %c0_12], %16 {strides = array<i32>} : memref<1x1x128xf32, #tpu.memory_space<vmem>>, vector<1x1x128xf32>,
    return
  }
  func.func @transform_0(%arg0: i32) -> (i32, i32) {
    %c0_i32 = arith.constant 0 : i32
    %c0_i32_0 = arith.constant 0 : i32
    return %arg0, %c0_i32 : i32, i32
  }
  func.func @transform_1(%arg0: i32) -> (i32, i32) {
    %c0_i32 = arith.constant 0 : i32
    %c0_i32_0 = arith.constant 0 : i32
    %c0_i32_1 = arith.constant 0 : i32
    return %c0_i32, %c0_i32_0 : i32, i32
  }
  func.func @transform_2(%arg0: i32) -> (i32, i32) {
    %c0_i32 = arith.constant 0 : i32
    %c0_i32_0 = arith.constant 0 : i32
    return %arg0, %c0_i32 : i32, i32
  }
  func.func @transform_3(%arg0: i32) -> (i32, i32, i32) {
    %c0_i32 = arith.constant 0 : i32
    %c0_i32_0 = arith.constant 0 : i32
    %c0_i32_1 = arith.constant 0 : i32
    return %arg0, %c0_i32, %c0_i32_0 : i32, i32, i32
  }
  func.func @transform_4(%arg0: i32) -> (i32, i32, i32) {
    %c0_i32 = arith.constant 0 : i32
    %c0_i32_0 = arith.constant 0 : i32
    %c0_i32_1 = arith.constant 0 : i32
    return %arg0, %c0_i32, %c0_i32_0 : i32, i32, i32
  }
}

</mosaic_0001>

<llo_original>
// kernel: tpu_custom_call.1
$region0: #{tpu_custom_call.1}
  #allocation0 [shape = 'u32[]', space=smem, size = 0x4, offset = 0x4, fixed_abs, tag = 'smem constant byte address 0x4 - core index']
  #allocation1 [shape = 'u32[72,128]{1,0:T(1,128)}', space=vmem, size = 0x9000, scoped, tag = 'internal scratch']
  %s0 = inlined_call_operand.hbm [shape: bf16[1024,128], index: 0, kind: input, shape index: {}]
  %s1 = inlined_call_operand.hbm [shape: bf16[128,128], index: 1, kind: input, shape index: {}]
  %s2 = inlined_call_operand.hbm [shape: bf16[1024,128], index: 2, kind: output, shape index: {0}]
  %s3 = inlined_call_operand.hbm [shape: f32[2,1,128], index: 3, kind: output, shape index: {1}]
  %s4 = inlined_call_operand.hbm [shape: f32[2,1,128], index: 4, kind: output, shape index: {2}]
  %5 = xla_tuple %s2, %s3, %s4
  %s6 = sld [smem:[#allocation0]]
  $region65: #{tpu_custom_call.1} parent=0
    _
  %s8 = ssub.s32 1, %s6
  %s9 = scalar_select 0, %s8, %s6
  $region1: #{tpu_custom_call.1} parent=0
    #allocation2 [shape = 'u8[262144]{0}', space=vmem, size = 0x40000, scoped, tag = 'input window, operand 0']
    #allocation3 [shape = 's32[2]{0}', space=sflag, size = 0x8, scoped, tag = 'scoped memory for tpu_custom_call.1']
    #allocation4 [shape = 's32[2]{0}', space=sflag, size = 0x8, scoped, tag = 'scoped memory for tpu_custom_call.1']
    #allocation5 [shape = 'u8[32768]{0}', space=vmem, size = 0x8000, scoped, tag = 'input window, operand 1, single buffered']
    #allocation6 [shape = 's32[1]{0}', space=sflag, size = 0x4, scoped, tag = 'scoped memory for tpu_custom_call.1']
    #allocation7 [shape = 'u8[262144]{0}', space=vmem, size = 0x40000, scoped, tag = 'output window, operand 0']
    #allocation8 [shape = 'u8[1024]{0}', space=vmem, size = 0x400, scoped, tag = 'output window, operand 1']
    #allocation9 [shape = 's32[2]{0}', space=sflag, size = 0x8, scoped, tag = 'scoped memory for tpu_custom_call.1']
    #allocation10 [shape = 'u8[1024]{0}', space=vmem, size = 0x400, scoped, tag = 'output window, operand 2']
    %10 = vsyncpa [#allocation3], 0
    %s11 = scalar_lea.sflag [#allocation3], 1
    %12 = vsyncpa %s11, 0
    %13 = vsyncpa [#allocation6], 0
    %14 = vsyncpa [#allocation4], 0
    %s15 = scalar_lea.sflag [#allocation4], 1
    %16 = vsyncpa %s15, 0
    %17 = vsyncpa [#allocation9], 0
    %s18 = scalar_lea.sflag [#allocation9], 1
    %19 = vsyncpa %s18, 0
    loop: start=0, step=1, limit=4
    $region2: #{tpu_custom_call.1} parent=1 // loop_pre_header
      _
    $region3: #{tpu_custom_call.1} parent=1 // loop_header
      %s21 = sphi 0, %s25
      %p22 = scmp.ge.s32.totalorder %s21, 4
      %s31 = sphi 0, %s33
      %s34 = sphi 0, %s31
      %s35 = sphi 0, %s34
      %s51 = sphi 0, %s35
      %s55 = sphi 0, %s55
      %s57 = sphi 0, %s55
      %s58 = sphi 0, %s57
      %s72 = sphi 0, %s58
      %s78 = sphi 0, %s80
      %s81 = sphi 0, %s78
      %s82 = sphi 0, %s81
      %s98 = sphi 0, %s82
      %s104 = sphi 0, %s106
      %s107 = sphi 0, %s104
      %s108 = sphi 0, %s107
      %s124 = sphi 0, %s108
      %s130 = sphi 0, %s132
      %s133 = sphi 0, %s130
      %s134 = sphi 0, %s133
      %s150 = sphi 0, %s134
    $region4: #{tpu_custom_call.1} parent=1 // loop_header_branch
      %24 = sbr.rel (%p22) target = $region8
    $region5: #{tpu_custom_call.1} parent=1 // loop_body
      %s26 = ssub.s32 %s21, 1
      %s27 = ssub.s32 %s21, 2
      %s28 = sadd.s32 %s21, 1
      %s29 = ssub.s32 %s21, %s28
      %p30 = scmp.eq.s32.totalorder %s29, 0
      %s32 = sadd.s32 %s31, 1
      %s33 = scalar_select %p30, %s31, %s32
      %p36 = pneg %p30
      %p37 = scmp.eq.s32.totalorder %s21, 1
      %p38 = por %p36, %p37
      %p39 = scmp.ne.s32.totalorder %s31, %s34
      %p40 = scmp.eq.s32.totalorder %s21, 0
      %p41 = por %p39, %p40
      %p42 = scmp.ne.s32.totalorder %s31, %s34
      %p43 = scmp.eq.s32.totalorder %s26, 1
      %p44 = por %p42, %p43
      %p45 = scmp.ne.s32.totalorder %s34, %s35
      %p46 = scmp.eq.s32.totalorder %s26, 0
      %p47 = por %p45, %p46
      %p48 = scmp.ne.s32.totalorder %s34, %s35
      %p49 = scmp.eq.s32.totalorder %s27, 1
      %p50 = por %p48, %p49
      %p52 = scmp.ne.s32.totalorder %s35, %s51
      %p53 = scmp.eq.s32.totalorder %s27, 0
      %p54 = por %p52, %p53
      %s56 = sadd.s32 %s55, 1
      %p59 = scmp.eq.s32.totalorder %s21, 1
      %p60 = scmp.ne.s32.totalorder %s55, %s57
      %p61 = scmp.eq.s32.totalorder %s21, 0
      %p62 = por %p60, %p61
      %p63 = scmp.ne.s32.totalorder %s55, %s57
      %p64 = scmp.eq.s32.totalorder %s26, 1
      %p65 = por %p63, %p64
      %p66 = scmp.ne.s32.totalorder %s57, %s58
      %p67 = scmp.eq.s32.totalorder %s26, 0
      %p68 = por %p66, %p67
      %p69 = scmp.ne.s32.totalorder %s57, %s58
      %p70 = scmp.eq.s32.totalorder %s27, 1
      %p71 = por %p69, %p70
      %p73 = scmp.ne.s32.totalorder %s58, %s72
      %p74 = scmp.eq.s32.totalorder %s27, 0
      %p75 = por %p73, %p74
      %s76 = ssub.s32 %s21, %s28
      %p77 = scmp.eq.s32.totalorder %s76, 0
      %s79 = sadd.s32 %s78, 1
      %s80 = scalar_select %p77, %s78, %s79
      %p83 = pneg %p77
      %p84 = scmp.eq.s32.totalorder %s21, 1
      %p85 = por %p83, %p84
      %p86 = scmp.ne.s32.totalorder %s78, %s81
      %p87 = scmp.eq.s32.totalorder %s21, 0
      %p88 = por %p86, %p87
      %p89 = scmp.ne.s32.totalorder %s78, %s81
      %p90 = scmp.eq.s32.totalorder %s26, 1
      %p91 = por %p89, %p90
      %p92 = scmp.ne.s32.totalorder %s81, %s82
      %p93 = scmp.eq.s32.totalorder %s26, 0
      %p94 = por %p92, %p93
      %p95 = scmp.ne.s32.totalorder %s81, %s82
      %p96 = scmp.eq.s32.totalorder %s27, 1
      %p97 = por %p95, %p96
      %p99 = scmp.ne.s32.totalorder %s82, %s98
      %p100 = scmp.eq.s32.totalorder %s27, 0
      %p101 = por %p99, %p100
      %s102 = ssub.s32 %s21, %s28
      %p103 = scmp.eq.s32.totalorder %s102, 0
      %s105 = sadd.s32 %s104, 1
      %s106 = scalar_select %p103, %s104, %s105
      %p109 = pneg %p103
      %p110 = scmp.eq.s32.totalorder %s21, 1
      %p111 = por %p109, %p110
      %p112 = scmp.ne.s32.totalorder %s104, %s107
      %p113 = scmp.eq.s32.totalorder %s21, 0
      %p114 = por %p112, %p113
      %p115 = scmp.ne.s32.totalorder %s104, %s107
      %p116 = scmp.eq.s32.totalorder %s26, 1
      %p117 = por %p115, %p116
      %p118 = scmp.ne.s32.totalorder %s107, %s108
      %p119 = scmp.eq.s32.totalorder %s26, 0
      %p120 = por %p118, %p119
      %p121 = scmp.ne.s32.totalorder %s107, %s108
      %p122 = scmp.eq.s32.totalorder %s27, 1
      %p123 = por %p121, %p122
      %p125 = scmp.ne.s32.totalorder %s108, %s124
      %p126 = scmp.eq.s32.totalorder %s27, 0
      %p127 = por %p125, %p126
      %s128 = ssub.s32 %s21, %s28
      %p129 = scmp.eq.s32.totalorder %s128, 0
      %s131 = sadd.s32 %s130, 1
      %s132 = scalar_select %p129, %s130, %s131
      %p135 = pneg %p129
      %p136 = scmp.eq.s32.totalorder %s21, 1
      %p137 = por %p135, %p136
      %p138 = scmp.ne.s32.totalorder %s130, %s133
      %p139 = scmp.eq.s32.totalorder %s21, 0
      %p140 = por %p138, %p139
      %p141 = scmp.ne.s32.totalorder %s130, %s133
      %p142 = scmp.eq.s32.totalorder %s26, 1
      %p143 = por %p141, %p142
      %p144 = scmp.ne.s32.totalorder %s133, %s134
      %p145 = scmp.eq.s32.totalorder %s26, 0
      %p146 = por %p144, %p145
      %p147 = scmp.ne.s32.totalorder %s133, %s134
      %p148 = scmp.eq.s32.totalorder %s27, 1
      %p149 = por %p147, %p148
      %p151 = scmp.ne.s32.totalorder %s134, %s150
      %p152 = scmp.eq.s32.totalorder %s27, 0
      %p153 = por %p151, %p152
      %p154 = scmp.le.s32.totalorder 1, %s21
      %p155 = scmp.lt.s32.totalorder %s21, 3
      %p156 = pnand %p154, %p155
      %p157 = pneg %p156
      // Predicated region
      $region9: #{tpu_custom_call.1} parent=5 // pred_check
        _
      $region10: #{tpu_custom_call.1} parent=5 // pred_check_branch
        %159 = sbr.rel (%p156) target = $region12
      $region11: #{tpu_custom_call.1} parent=5 // pred_region
        %s160 = ssub.s32 %s21, 1
        // Predicated region
        $region13: #{tpu_custom_call.1} parent=11 // pred_check
          %p161 = pneg %p68
        $region14: #{tpu_custom_call.1} parent=11 // pred_check_branch
          %163 = sbr.rel (%p161) target = $region16
        $region15: #{tpu_custom_call.1} parent=11 // pred_region
          %165 = vsyncadd [#allocation6], 0
          %s166 = sshll.u32 %s1, 4
          %s167 = int_to_ptr.hbm [resolvable:$true] %s166
          %s168 = sshll.u32 [#allocation5], 4
          %s169 = int_to_ptr.vmem [resolvable:$true] %s168
          %174 = dma.hbm_to_vmem [thread:$0]  %s167, 1024, %s169, [#allocation6], 64, 64, 4
        $region16: #{tpu_custom_call.1} parent=11 // pred_fallthru
          _
      $region12: #{tpu_custom_call.1} parent=5 // pred_fallthru
        _
      %p175 = scmp.lt.s32.totalorder %s21, 2
      // Predicated region
      $region17: #{tpu_custom_call.1} parent=5 // pred_check
        %p176 = pneg %p175
      $region18: #{tpu_custom_call.1} parent=5 // pred_check_branch
        %178 = sbr.rel (%p176) target = $region20
      $region19: #{tpu_custom_call.1} parent=5 // pred_region
        // Predicated region
        $region21: #{tpu_custom_call.1} parent=19 // pred_check
          %p179 = pneg %p41
        $region22: #{tpu_custom_call.1} parent=19 // pred_check_branch
          %181 = sbr.rel (%p179) target = $region24
        $region23: #{tpu_custom_call.1} parent=19 // pred_region
          %s182 = sand.u32 %s31, 1
          %s183 = scalar_lea.sflag [#allocation3], %s182
          %s184 = sand.u32 %s31, 1
          %s185 = smul.addr %s184, 256
          %s186 = scalar_lea.vmem [#allocation2], %s185
          %s187 = smul.u32 64, %s21
          %189 = vsyncadd %s183, 0
          %s190 = smul.addr %s187, 4
          %s191 = scalar_lea.hbm %s0, %s190
          %s192 = sshll.u32 %s191, 4
          %s193 = int_to_ptr.hbm [resolvable:$true] %s192
          %s194 = sshll.u32 %s186, 4
          %s195 = int_to_ptr.vmem [resolvable:$true] %s194
          %200 = dma.hbm_to_vmem [thread:$0]  %s193, 4096, %s195, %s183, 64, 64, 4
        $region24: #{tpu_custom_call.1} parent=19 // pred_fallthru
          _
      $region20: #{tpu_custom_call.1} parent=5 // pred_fallthru
        _
      %p201 = scmp.le.s32.totalorder 1, %s21
      %p202 = scmp.lt.s32.totalorder %s21, 3
      %p203 = pnand %p201, %p202
      %p204 = pneg %p203
      // Predicated region
      $region25: #{tpu_custom_call.1} parent=5 // pred_check
        _
      $region26: #{tpu_custom_call.1} parent=5 // pred_check_branch
        %206 = sbr.rel (%p203) target = $region28
      $region27: #{tpu_custom_call.1} parent=5 // pred_region
        %s207 = ssub.s32 %s21, 1
        %s208 = sand.u32 %s34, 1
        %s209 = scalar_lea.sflag [#allocation3], %s208
        %s210 = sand.u32 %s34, 1
        %s211 = smul.addr %s210, 256
        %s212 = scalar_lea.vmem [#allocation2], %s211
        // Predicated region
        $region29: #{tpu_custom_call.1} parent=27 // pred_check
          %p213 = pneg %p47
        $region30: #{tpu_custom_call.1} parent=27 // pred_check_branch
          %215 = sbr.rel (%p213) target = $region32
        $region31: #{tpu_custom_call.1} parent=27 // pred_region
          %217 = dma.done %s209, 4096
        $region32: #{tpu_custom_call.1} parent=27 // pred_fallthru
          _
        // Predicated region
        $region33: #{tpu_custom_call.1} parent=27 // pred_check
          %p218 = pneg %p68
        $region34: #{tpu_custom_call.1} parent=27 // pred_check_branch
          %220 = sbr.rel (%p218) target = $region36
        $region35: #{tpu_custom_call.1} parent=27 // pred_region
          %222 = dma.done [#allocation6], 1024
        $region36: #{tpu_custom_call.1} parent=27 // pred_fallthru
          _
        %s223 = sand.u32 %s34, 1
        %s224 = scalar_lea.sflag [#allocation3], %s223
        %s225 = sand.u32 %s34, 1
        %s226 = smul.addr %s225, 256
        %s227 = scalar_lea.vmem [#allocation2], %s226
        %p228 = pneg %p47
        %p229 = pneg %p44
        %p230 = pneg %p68
        %p231 = pneg %p65
        %p232 = pneg %p94
        %p233 = pneg %p91
        %s234 = sand.u32 %s81, 1
        %s235 = scalar_lea.sflag [#allocation4], %s234
        %s236 = sand.u32 %s81, 1
        %s237 = smul.addr %s236, 256
        %s238 = scalar_lea.vmem [#allocation7], %s237
        %p239 = pneg %p120
        %p240 = pneg %p117
        %s241 = sand.u32 %s26, 1
        %s242 = scalar_lea.sflag [#allocation9], %s241
        %s243 = sand.u32 %s107, 1
        %s244 = scalar_lea.vmem [#allocation8], %s243
        %p245 = pneg %p146
        %p246 = pneg %p143
        %s247 = sand.u32 %s26, 1
        %s248 = scalar_lea.sflag [#allocation9], %s247
        %s249 = sand.u32 %s133, 1
        %s250 = scalar_lea.vmem [#allocation10], %s249
        %s251 = smul.u32 64, %s26
        %s252 = smul.u32 64, %s26
        %v253 = vld [vmem:[%s212] sm:$0xf]
        %v254 = vld [vmem:[%s212 + $0x4] sm:$0xf]
        %v255 = vld [vmem:[%s212 + $0x8] sm:$0xf]
        %v256 = vld [vmem:[%s212 + $0xc] sm:$0xf]
        %v257 = vld [vmem:[%s212 + $0x10] sm:$0xf]
        %v258 = vld [vmem:[%s212 + $0x14] sm:$0xf]
        %v259 = vld [vmem:[%s212 + $0x18] sm:$0xf]
        %v260 = vld [vmem:[%s212 + $0x1c] sm:$0xf]
        %v261 = vld [vmem:[%s212 + $0x20] sm:$0xf]
        %v262 = vld [vmem:[%s212 + $0x24] sm:$0xf]
        %v263 = vld [vmem:[%s212 + $0x28] sm:$0xf]
        %v264 = vld [vmem:[%s212 + $0x2c] sm:$0xf]
        %v265 = vld [vmem:[%s212 + $0x30] sm:$0xf]
        %v266 = vld [vmem:[%s212 + $0x34] sm:$0xf]
        %v267 = vld [vmem:[%s212 + $0x38] sm:$0xf]
        %v268 = vld [vmem:[%s212 + $0x3c] sm:$0xf]
        %v269 = vld [vmem:[%s212 + $0x40] sm:$0xf]
        %v270 = vld [vmem:[%s212 + $0x44] sm:$0xf]
        %v271 = vld [vmem:[%s212 + $0x48] sm:$0xf]
        %v272 = vld [vmem:[%s212 + $0x4c] sm:$0xf]
        %v273 = vld [vmem:[%s212 + $0x50] sm:$0xf]
        %v274 = vld [vmem:[%s212 + $0x54] sm:$0xf]
        %v275 = vld [vmem:[%s212 + $0x58] sm:$0xf]
        %v276 = vld [vmem:[%s212 + $0x5c] sm:$0xf]
        %v277 = vld [vmem:[%s212 + $0x60] sm:$0xf]
        %v278 = vld [vmem:[%s212 + $0x64] sm:$0xf]
        %v279 = vld [vmem:[%s212 + $0x68] sm:$0xf]
        %v280 = vld [vmem:[%s212 + $0x6c] sm:$0xf]
        %v281 = vld [vmem:[%s212 + $0x70] sm:$0xf]
        %v282 = vld [vmem:[%s212 + $0x74] sm:$0xf]
        %v283 = vld [vmem:[%s212 + $0x78] sm:$0xf]
        %v284 = vld [vmem:[%s212 + $0x7c] sm:$0xf]
        %v285 = vld [vmem:[%s212 + $0x80] sm:$0xf]
        %v286 = vld [vmem:[%s212 + $0x84] sm:$0xf]
        %v287 = vld [vmem:[%s212 + $0x88] sm:$0xf]
        %v288 = vld [vmem:[%s212 + $0x8c] sm:$0xf]
        %v289 = vld [vmem:[%s212 + $0x90] sm:$0xf]
        %v290 = vld [vmem:[%s212 + $0x94] sm:$0xf]
        %v291 = vld [vmem:[%s212 + $0x98] sm:$0xf]
        %v292 = vld [vmem:[%s212 + $0x9c] sm:$0xf]
        %v293 = vld [vmem:[%s212 + $0xa0] sm:$0xf]
        %v294 = vld [vmem:[%s212 + $0xa4] sm:$0xf]
        %v295 = vld [vmem:[%s212 + $0xa8] sm:$0xf]
        %v296 = vld [vmem:[%s212 + $0xac] sm:$0xf]
        %v297 = vld [vmem:[%s212 + $0xb0] sm:$0xf]
        %v298 = vld [vmem:[%s212 + $0xb4] sm:$0xf]
        %v299 = vld [vmem:[%s212 + $0xb8] sm:$0xf]
        %v300 = vld [vmem:[%s212 + $0xbc] sm:$0xf]
        %v301 = vld [vmem:[%s212 + $0xc0] sm:$0xf]
        %v302 = vld [vmem:[%s212 + $0xc4] sm:$0xf]
        %v303 = vld [vmem:[%s212 + $0xc8] sm:$0xf]
        %v304 = vld [vmem:[%s212 + $0xcc] sm:$0xf]
        %v305 = vld [vmem:[%s212 + $0xd0] sm:$0xf]
        %v306 = vld [vmem:[%s212 + $0xd4] sm:$0xf]
        %v307 = vld [vmem:[%s212 + $0xd8] sm:$0xf]
        %v308 = vld [vmem:[%s212 + $0xdc] sm:$0xf]
        %v309 = vld [vmem:[%s212 + $0xe0] sm:$0xf]
        %v310 = vld [vmem:[%s212 + $0xe4] sm:$0xf]
        %v311 = vld [vmem:[%s212 + $0xe8] sm:$0xf]
        %v312 = vld [vmem:[%s212 + $0xec] sm:$0xf]
        %v313 = vld [vmem:[%s212 + $0xf0] sm:$0xf]
        %v314 = vld [vmem:[%s212 + $0xf4] sm:$0xf]
        %v315 = vld [vmem:[%s212 + $0xf8] sm:$0xf]
        %v316 = vld [vmem:[%s212 + $0xfc] sm:$0xf]
        %v317 = vld [vmem:[#allocation5] sm:$0xf]
        %v318 = vld [vmem:[#allocation5 + $0x4] sm:$0xf]
        %v319 = vld [vmem:[#allocation5 + $0x8] sm:$0xf]
        %v320 = vld [vmem:[#allocation5 + $0xc] sm:$0xf]
        %v321 = vld [vmem:[#allocation5 + $0x10] sm:$0xf]
        %v322 = vld [vmem:[#allocation5 + $0x14] sm:$0xf]
        %v323 = vld [vmem:[#allocation5 + $0x18] sm:$0xf]
        %v324 = vld [vmem:[#allocation5 + $0x1c] sm:$0xf]
        %v325 = vld [vmem:[#allocation5 + $0x20] sm:$0xf]
        %v326 = vld [vmem:[#allocation5 + $0x24] sm:$0xf]
        %v327 = vld [vmem:[#allocation5 + $0x28] sm:$0xf]
        %v328 = vld [vmem:[#allocation5 + $0x2c] sm:$0xf]
        %v329 = vld [vmem:[#allocation5 + $0x30] sm:$0xf]
        %v330 = vld [vmem:[#allocation5 + $0x34] sm:$0xf]
        %v331 = vld [vmem:[#allocation5 + $0x38] sm:$0xf]
        %v332 = vld [vmem:[#allocation5 + $0x3c] sm:$0xf]
        %v397 = vunpack.c.l.b16 %v253
        %v398 = vunpack.c.l.b16 %v254
        %v399 = vunpack.c.l.b16 %v255
        %v400 = vunpack.c.l.b16 %v256
        %v401 = vunpack.c.l.b16 %v257
        %v402 = vunpack.c.l.b16 %v258
        %v403 = vunpack.c.l.b16 %v259
        %v404 = vunpack.c.l.b16 %v260
        %v405 = vunpack.c.l.b16 %v261
        %v406 = vunpack.c.l.b16 %v262
        %v407 = vunpack.c.l.b16 %v263
        %v408 = vunpack.c.l.b16 %v264
        %v409 = vunpack.c.l.b16 %v265
        %v410 = vunpack.c.l.b16 %v266
        %v411 = vunpack.c.l.b16 %v267
        %v412 = vunpack.c.l.b16 %v268
        %v413 = vunpack.c.l.b16 %v269
        %v414 = vunpack.c.l.b16 %v270
        %v415 = vunpack.c.l.b16 %v271
        %v416 = vunpack.c.l.b16 %v272
        %v417 = vunpack.c.l.b16 %v273
        %v418 = vunpack.c.l.b16 %v274
        %v419 = vunpack.c.l.b16 %v275
        %v420 = vunpack.c.l.b16 %v276
        %v421 = vunpack.c.l.b16 %v277
        %v422 = vunpack.c.l.b16 %v278
        %v423 = vunpack.c.l.b16 %v279
        %v424 = vunpack.c.l.b16 %v280
        %v425 = vunpack.c.l.b16 %v281
        %v426 = vunpack.c.l.b16 %v282
        %v427 = vunpack.c.l.b16 %v283
        %v428 = vunpack.c.l.b16 %v284
        %v429 = vunpack.c.l.b16 %v285
        %v430 = vunpack.c.l.b16 %v286
        %v431 = vunpack.c.l.b16 %v287
        %v432 = vunpack.c.l.b16 %v288
        %v433 = vunpack.c.l.b16 %v289
        %v434 = vunpack.c.l.b16 %v290
        %v435 = vunpack.c.l.b16 %v291
        %v436 = vunpack.c.l.b16 %v292
        %v437 = vunpack.c.l.b16 %v293
        %v438 = vunpack.c.l.b16 %v294
        %v439 = vunpack.c.l.b16 %v295
        %v440 = vunpack.c.l.b16 %v296
        %v441 = vunpack.c.l.b16 %v297
        %v442 = vunpack.c.l.b16 %v298
        %v443 = vunpack.c.l.b16 %v299
        %v444 = vunpack.c.l.b16 %v300
        %v445 = vunpack.c.l.b16 %v301
        %v446 = vunpack.c.l.b16 %v302
        %v447 = vunpack.c.l.b16 %v303
        %v448 = vunpack.c.l.b16 %v304
        %v449 = vunpack.c.l.b16 %v305
        %v450 = vunpack.c.l.b16 %v306
        %v451 = vunpack.c.l.b16 %v307
        %v452 = vunpack.c.l.b16 %v308
        %v453 = vunpack.c.l.b16 %v309
        %v454 = vunpack.c.l.b16 %v310
        %v455 = vunpack.c.l.b16 %v311
        %v456 = vunpack.c.l.b16 %v312
        %v457 = vunpack.c.l.b16 %v313
        %v458 = vunpack.c.l.b16 %v314
        %v459 = vunpack.c.l.b16 %v315
        %v460 = vunpack.c.l.b16 %v316
        %v461 = vpack.c.b16 %v398, %v397
        %v462 = vpack.c.b16 %v400, %v399
        %v463 = vpack.c.b16 %v402, %v401
        %v464 = vpack.c.b16 %v404, %v403
        %v465 = vpack.c.b16 %v406, %v405
        %v466 = vpack.c.b16 %v408, %v407
        %v467 = vpack.c.b16 %v410, %v409
        %v468 = vpack.c.b16 %v412, %v411
        %v469 = vpack.c.b16 %v414, %v413
        %v470 = vpack.c.b16 %v416, %v415
        %v471 = vpack.c.b16 %v418, %v417
        %v472 = vpack.c.b16 %v420, %v419
        %v473 = vpack.c.b16 %v422, %v421
        %v474 = vpack.c.b16 %v424, %v423
        %v475 = vpack.c.b16 %v426, %v425
        %v476 = vpack.c.b16 %v428, %v427
        %v477 = vpack.c.b16 %v430, %v429
        %v478 = vpack.c.b16 %v432, %v431
        %v479 = vpack.c.b16 %v434, %v433
        %v480 = vpack.c.b16 %v436, %v435
        %v481 = vpack.c.b16 %v438, %v437
        %v482 = vpack.c.b16 %v440, %v439
        %v483 = vpack.c.b16 %v442, %v441
        %v484 = vpack.c.b16 %v444, %v443
        %v485 = vpack.c.b16 %v446, %v445
        %v486 = vpack.c.b16 %v448, %v447
        %v487 = vpack.c.b16 %v450, %v449
        %v488 = vpack.c.b16 %v452, %v451
        %v489 = vpack.c.b16 %v454, %v453
        %v490 = vpack.c.b16 %v456, %v455
        %v491 = vpack.c.b16 %v458, %v457
        %v492 = vpack.c.b16 %v460, %v459
        %v541 = vunpack.c.l.b16 %v317
        %v542 = vunpack.c.l.b16 %v318
        %v543 = vunpack.c.l.b16 %v319
        %v544 = vunpack.c.l.b16 %v320
        %v545 = vunpack.c.l.b16 %v321
        %v546 = vunpack.c.l.b16 %v322
        %v547 = vunpack.c.l.b16 %v323
        %v548 = vunpack.c.l.b16 %v324
        %v549 = vunpack.c.l.b16 %v325
        %v550 = vunpack.c.l.b16 %v326
        %v551 = vunpack.c.l.b16 %v327
        %v552 = vunpack.c.l.b16 %v328
        %v553 = vunpack.c.l.b16 %v329
        %v554 = vunpack.c.l.b16 %v330
        %v555 = vunpack.c.l.b16 %v331
        %v556 = vunpack.c.l.b16 %v332
        %v557 = vpack.c.b16 %v542, %v541
        %v558 = vpack.c.b16 %v544, %v543
        %v559 = vpack.c.b16 %v546, %v545
        %v560 = vpack.c.b16 %v548, %v547
        %v561 = vpack.c.b16 %v550, %v549
        %v562 = vpack.c.b16 %v552, %v551
        %v563 = vpack.c.b16 %v554, %v553
        %v564 = vpack.c.b16 %v556, %v555
        %573 = vmatpush.bf16.msra.mxu0 %v564
        %574 = vmatpush.bf16.msra.mxu0 %v563
        %575 = vmatpush.bf16.msra.mxu0 %v562
        %576 = vmatpush.bf16.msra.mxu0 %v561
        %577 = vmatpush.bf16.msra.mxu0 %v560
        %578 = vmatpush.bf16.msra.mxu0 %v559
        %579 = vmatpush.bf16.msra.mxu0 %v558
        %580 = vmatpush.bf16.msra.mxu0 %v557
        %581 = vmatmul.bf16.gmra.mxu0 %v461
        %v582 = vpop.f32.mrf.mxu0
        %v583 = vadd.f32 0.0, %v582
        %v584 = vpop.f32.mrf.mxu0
        %v585 = vadd.f32 0.0, %v584
        %586 = vmatmul.bf16.gmra.mxu0 %v462
        %v587 = vpop.f32.mrf.mxu0
        %v588 = vadd.f32 0.0, %v587
        %v589 = vpop.f32.mrf.mxu0
        %v590 = vadd.f32 0.0, %v589
        %591 = vmatmul.bf16.gmra.mxu0 %v463
        %v592 = vpop.f32.mrf.mxu0
        %v593 = vadd.f32 0.0, %v592
        %v594 = vpop.f32.mrf.mxu0
        %v595 = vadd.f32 0.0, %v594
        %596 = vmatmul.bf16.gmra.mxu0 %v464
        %v597 = vpop.f32.mrf.mxu0
        %v598 = vadd.f32 0.0, %v597
        %v599 = vpop.f32.mrf.mxu0
        %v600 = vadd.f32 0.0, %v599
        %601 = vmatmul.bf16.gmra.mxu0 %v465
        %v602 = vpop.f32.mrf.mxu0
        %v603 = vadd.f32 0.0, %v602
        %v604 = vpop.f32.mrf.mxu0
        %v605 = vadd.f32 0.0, %v604
        %606 = vmatmul.bf16.gmra.mxu0 %v466
        %v607 = vpop.f32.mrf.mxu0
        %v608 = vadd.f32 0.0, %v607
        %v609 = vpop.f32.mrf.mxu0
        %v610 = vadd.f32 0.0, %v609
        %611 = vmatmul.bf16.gmra.mxu0 %v467
        %v612 = vpop.f32.mrf.mxu0
        %v613 = vadd.f32 0.0, %v612
        %v614 = vpop.f32.mrf.mxu0
        %v615 = vadd.f32 0.0, %v614
        %616 = vmatmul.bf16.gmra.mxu0 %v468
        %v617 = vpop.f32.mrf.mxu0
        %v618 = vadd.f32 0.0, %v617
        %v619 = vpop.f32.mrf.mxu0
        %v620 = vadd.f32 0.0, %v619
        %621 = vmatmul.bf16.gmra.mxu0 %v469
        %v622 = vpop.f32.mrf.mxu0
        %v623 = vadd.f32 0.0, %v622
        %v624 = vpop.f32.mrf.mxu0
        %v625 = vadd.f32 0.0, %v624
        %626 = vmatmul.bf16.gmra.mxu0 %v470
        %v627 = vpop.f32.mrf.mxu0
        %v628 = vadd.f32 0.0, %v627
        %v629 = vpop.f32.mrf.mxu0
        %v630 = vadd.f32 0.0, %v629
        %631 = vmatmul.bf16.gmra.mxu0 %v471
        %v632 = vpop.f32.mrf.mxu0
        %v633 = vadd.f32 0.0, %v632
        %v634 = vpop.f32.mrf.mxu0
        %v635 = vadd.f32 0.0, %v634
        %636 = vmatmul.bf16.gmra.mxu0 %v472
        %v637 = vpop.f32.mrf.mxu0
        %v638 = vadd.f32 0.0, %v637
        %v639 = vpop.f32.mrf.mxu0
        %v640 = vadd.f32 0.0, %v639
        %641 = vmatmul.bf16.gmra.mxu0 %v473
        %v642 = vpop.f32.mrf.mxu0
        %v643 = vadd.f32 0.0, %v642
        %v644 = vpop.f32.mrf.mxu0
        %v645 = vadd.f32 0.0, %v644
        %646 = vmatmul.bf16.gmra.mxu0 %v474
        %v647 = vpop.f32.mrf.mxu0
        %v648 = vadd.f32 0.0, %v647
        %v649 = vpop.f32.mrf.mxu0
        %v650 = vadd.f32 0.0, %v649
        %651 = vmatmul.bf16.gmra.mxu0 %v475
        %v652 = vpop.f32.mrf.mxu0
        %v653 = vadd.f32 0.0, %v652
        %v654 = vpop.f32.mrf.mxu0
        %v655 = vadd.f32 0.0, %v654
        %656 = vmatmul.bf16.gmra.mxu0 %v476
        %v657 = vpop.f32.mrf.mxu0
        %v658 = vadd.f32 0.0, %v657
        %v659 = vpop.f32.mrf.mxu0
        %v660 = vadd.f32 0.0, %v659
        %661 = vmatmul.bf16.gmra.mxu0 %v477
        %v662 = vpop.f32.mrf.mxu0
        %v663 = vadd.f32 0.0, %v662
        %v664 = vpop.f32.mrf.mxu0
        %v665 = vadd.f32 0.0, %v664
        %666 = vmatmul.bf16.gmra.mxu0 %v478
        %v667 = vpop.f32.mrf.mxu0
        %v668 = vadd.f32 0.0, %v667
        %v669 = vpop.f32.mrf.mxu0
        %v670 = vadd.f32 0.0, %v669
        %671 = vmatmul.bf16.gmra.mxu0 %v479
        %v672 = vpop.f32.mrf.mxu0
        %v673 = vadd.f32 0.0, %v672
        %v674 = vpop.f32.mrf.mxu0
        %v675 = vadd.f32 0.0, %v674
        %676 = vmatmul.bf16.gmra.mxu0 %v480
        %v677 = vpop.f32.mrf.mxu0
        %v678 = vadd.f32 0.0, %v677
        %v679 = vpop.f32.mrf.mxu0
        %v680 = vadd.f32 0.0, %v679
        %681 = vmatmul.bf16.gmra.mxu0 %v481
        %v682 = vpop.f32.mrf.mxu0
        %v683 = vadd.f32 0.0, %v682
        %v684 = vpop.f32.mrf.mxu0
        %v685 = vadd.f32 0.0, %v684
        %686 = vmatmul.bf16.gmra.mxu0 %v482
        %v687 = vpop.f32.mrf.mxu0
        %v688 = vadd.f32 0.0, %v687
        %v689 = vpop.f32.mrf.mxu0
        %v690 = vadd.f32 0.0, %v689
        %691 = vmatmul.bf16.gmra.mxu0 %v483
        %v692 = vpop.f32.mrf.mxu0
        %v693 = vadd.f32 0.0, %v692
        %v694 = vpop.f32.mrf.mxu0
        %v695 = vadd.f32 0.0, %v694
        %696 = vmatmul.bf16.gmra.mxu0 %v484
        %v697 = vpop.f32.mrf.mxu0
        %v698 = vadd.f32 0.0, %v697
        %v699 = vpop.f32.mrf.mxu0
        %v700 = vadd.f32 0.0, %v699
        %701 = vmatmul.bf16.gmra.mxu0 %v485
        %v702 = vpop.f32.mrf.mxu0
        %v703 = vadd.f32 0.0, %v702
        %v704 = vpop.f32.mrf.mxu0
        %v705 = vadd.f32 0.0, %v704
        %706 = vmatmul.bf16.gmra.mxu0 %v486
        %v707 = vpop.f32.mrf.mxu0
        %v708 = vadd.f32 0.0, %v707
        %v709 = vpop.f32.mrf.mxu0
        %v710 = vadd.f32 0.0, %v709
        %711 = vmatmul.bf16.gmra.mxu0 %v487
        %v712 = vpop.f32.mrf.mxu0
        %v713 = vadd.f32 0.0, %v712
        %v714 = vpop.f32.mrf.mxu0
        %v715 = vadd.f32 0.0, %v714
        %716 = vmatmul.bf16.gmra.mxu0 %v488
        %v717 = vpop.f32.mrf.mxu0
        %v718 = vadd.f32 0.0, %v717
        %v719 = vpop.f32.mrf.mxu0
        %v720 = vadd.f32 0.0, %v719
        %721 = vmatmul.bf16.gmra.mxu0 %v489
        %v722 = vpop.f32.mrf.mxu0
        %v723 = vadd.f32 0.0, %v722
        %v724 = vpop.f32.mrf.mxu0
        %v725 = vadd.f32 0.0, %v724
        %726 = vmatmul.bf16.gmra.mxu0 %v490
        %v727 = vpop.f32.mrf.mxu0
        %v728 = vadd.f32 0.0, %v727
        %v729 = vpop.f32.mrf.mxu0
        %v730 = vadd.f32 0.0, %v729
        %731 = vmatmul.bf16.gmra.mxu0 %v491
        %v732 = vpop.f32.mrf.mxu0
        %v733 = vadd.f32 0.0, %v732
        %v734 = vpop.f32.mrf.mxu0
        %v735 = vadd.f32 0.0, %v734
        %736 = vmatmul.bf16.gmra.mxu0 %v492
        %v737 = vpop.f32.mrf.mxu0
        %v738 = vadd.f32 0.0, %v737
        %v739 = vpop.f32.mrf.mxu0
        %v740 = vadd.f32 0.0, %v739
        %741 = vdwg.mxu0
        %v742 = vpack.c.bf16 %v583, %v583
        %v743 = vpack.c.bf16 %v585, %v585
        %v744 = vpack.c.bf16 %v588, %v588
        %v745 = vpack.c.bf16 %v590, %v590
        %v746 = vpack.c.bf16 %v593, %v593
        %v747 = vpack.c.bf16 %v595, %v595
        %v748 = vpack.c.bf16 %v598, %v598
        %v749 = vpack.c.bf16 %v600, %v600
        %v750 = vpack.c.bf16 %v603, %v603
        %v751 = vpack.c.bf16 %v605, %v605
        %v752 = vpack.c.bf16 %v608, %v608
        %v753 = vpack.c.bf16 %v610, %v610
        %v754 = vpack.c.bf16 %v613, %v613
        %v755 = vpack.c.bf16 %v615, %v615
        %v756 = vpack.c.bf16 %v618, %v618
        %v757 = vpack.c.bf16 %v620, %v620
        %v758 = vpack.c.bf16 %v623, %v623
        %v759 = vpack.c.bf16 %v625, %v625
        %v760 = vpack.c.bf16 %v628, %v628
        %v761 = vpack.c.bf16 %v630, %v630
        %v762 = vpack.c.bf16 %v633, %v633
        %v763 = vpack.c.bf16 %v635, %v635
        %v764 = vpack.c.bf16 %v638, %v638
        %v765 = vpack.c.bf16 %v640, %v640
        %v766 = vpack.c.bf16 %v643, %v643
        %v767 = vpack.c.bf16 %v645, %v645
        %v768 = vpack.c.bf16 %v648, %v648
        %v769 = vpack.c.bf16 %v650, %v650
        %v770 = vpack.c.bf16 %v653, %v653
        %v771 = vpack.c.bf16 %v655, %v655
        %v772 = vpack.c.bf16 %v658, %v658
        %v773 = vpack.c.bf16 %v660, %v660
        %v774 = vpack.c.bf16 %v663, %v663
        %v775 = vpack.c.bf16 %v665, %v665
        %v776 = vpack.c.bf16 %v668, %v668
        %v777 = vpack.c.bf16 %v670, %v670
        %v778 = vpack.c.bf16 %v673, %v673
        %v779 = vpack.c.bf16 %v675, %v675
        %v780 = vpack.c.bf16 %v678, %v678
        %v781 = vpack.c.bf16 %v680, %v680
        %v782 = vpack.c.bf16 %v683, %v683
        %v783 = vpack.c.bf16 %v685, %v685
        %v784 = vpack.c.bf16 %v688, %v688
        %v785 = vpack.c.bf16 %v690, %v690
        %v786 = vpack.c.bf16 %v693, %v693
        %v787 = vpack.c.bf16 %v695, %v695
        %v788 = vpack.c.bf16 %v698, %v698
        %v789 = vpack.c.bf16 %v700, %v700
        %v790 = vpack.c.bf16 %v703, %v703
        %v791 = vpack.c.bf16 %v705, %v705
        %v792 = vpack.c.bf16 %v708, %v708
        %v793 = vpack.c.bf16 %v710, %v710
        %v794 = vpack.c.bf16 %v713, %v713
        %v795 = vpack.c.bf16 %v715, %v715
        %v796 = vpack.c.bf16 %v718, %v718
        %v797 = vpack.c.bf16 %v720, %v720
        %v798 = vpack.c.bf16 %v723, %v723
        %v799 = vpack.c.bf16 %v725, %v725
        %v800 = vpack.c.bf16 %v728, %v728
        %v801 = vpack.c.bf16 %v730, %v730
        %v802 = vpack.c.bf16 %v733, %v733
        %v803 = vpack.c.bf16 %v735, %v735
        %v804 = vpack.c.bf16 %v738, %v738
        %v805 = vpack.c.bf16 %v740, %v740
        %806 = vst [vmem:[%s238] sm:$0xf] %v742
        %807 = vst [vmem:[%s238 + $0x4] sm:$0xf] %v743
        %808 = vst [vmem:[%s238 + $0x8] sm:$0xf] %v744
        %809 = vst [vmem:[%s238 + $0xc] sm:$0xf] %v745
        %810 = vst [vmem:[%s238 + $0x10] sm:$0xf] %v746
        %811 = vst [vmem:[%s238 + $0x14] sm:$0xf] %v747
        %812 = vst [vmem:[%s238 + $0x18] sm:$0xf] %v748
        %813 = vst [vmem:[%s238 + $0x1c] sm:$0xf] %v749
        %814 = vst [vmem:[%s238 + $0x20] sm:$0xf] %v750
        %815 = vst [vmem:[%s238 + $0x24] sm:$0xf] %v751
        %816 = vst [vmem:[%s238 + $0x28] sm:$0xf] %v752
        %817 = vst [vmem:[%s238 + $0x2c] sm:$0xf] %v753
        %818 = vst [vmem:[%s238 + $0x30] sm:$0xf] %v754
        %819 = vst [vmem:[%s238 + $0x34] sm:$0xf] %v755
        %820 = vst [vmem:[%s238 + $0x38] sm:$0xf] %v756
        %821 = vst [vmem:[%s238 + $0x3c] sm:$0xf] %v757
        %822 = vst [vmem:[%s238 + $0x40] sm:$0xf] %v758
        %823 = vst [vmem:[%s238 + $0x44] sm:$0xf] %v759
        %824 = vst [vmem:[%s238 + $0x48] sm:$0xf] %v760
        %825 = vst [vmem:[%s238 + $0x4c] sm:$0xf] %v761
        %826 = vst [vmem:[%s238 + $0x50] sm:$0xf] %v762
        %827 = vst [vmem:[%s238 + $0x54] sm:$0xf] %v763
        %828 = vst [vmem:[%s238 + $0x58] sm:$0xf] %v764
        %829 = vst [vmem:[%s238 + $0x5c] sm:$0xf] %v765
        %830 = vst [vmem:[%s238 + $0x60] sm:$0xf] %v766
        %831 = vst [vmem:[%s238 + $0x64] sm:$0xf] %v767
        %832 = vst [vmem:[%s238 + $0x68] sm:$0xf] %v768
        %833 = vst [vmem:[%s238 + $0x6c] sm:$0xf] %v769
        %834 = vst [vmem:[%s238 + $0x70] sm:$0xf] %v770
        %835 = vst [vmem:[%s238 + $0x74] sm:$0xf] %v771
        %836 = vst [vmem:[%s238 + $0x78] sm:$0xf] %v772
        %837 = vst [vmem:[%s238 + $0x7c] sm:$0xf] %v773
        %838 = vst [vmem:[%s238 + $0x80] sm:$0xf] %v774
        %839 = vst [vmem:[%s238 + $0x84] sm:$0xf] %v775
        %840 = vst [vmem:[%s238 + $0x88] sm:$0xf] %v776
        %841 = vst [vmem:[%s238 + $0x8c] sm:$0xf] %v777
        %842 = vst [vmem:[%s238 + $0x90] sm:$0xf] %v778
        %843 = vst [vmem:[%s238 + $0x94] sm:$0xf] %v779
        %844 = vst [vmem:[%s238 + $0x98] sm:$0xf] %v780
        %845 = vst [vmem:[%s238 + $0x9c] sm:$0xf] %v781
        %846 = vst [vmem:[%s238 + $0xa0] sm:$0xf] %v782
        %847 = vst [vmem:[%s238 + $0xa4] sm:$0xf] %v783
        %848 = vst [vmem:[%s238 + $0xa8] sm:$0xf] %v784
        %849 = vst [vmem:[%s238 + $0xac] sm:$0xf] %v785
        %850 = vst [vmem:[%s238 + $0xb0] sm:$0xf] %v786
        %851 = vst [vmem:[%s238 + $0xb4] sm:$0xf] %v787
        %852 = vst [vmem:[%s238 + $0xb8] sm:$0xf] %v788
        %853 = vst [vmem:[%s238 + $0xbc] sm:$0xf] %v789
        %854 = vst [vmem:[%s238 + $0xc0] sm:$0xf] %v790
        %855 = vst [vmem:[%s238 + $0xc4] sm:$0xf] %v791
        %856 = vst [vmem:[%s238 + $0xc8] sm:$0xf] %v792
        %857 = vst [vmem:[%s238 + $0xcc] sm:$0xf] %v793
        %858 = vst [vmem:[%s238 + $0xd0] sm:$0xf] %v794
        %859 = vst [vmem:[%s238 + $0xd4] sm:$0xf] %v795
        %860 = vst [vmem:[%s238 + $0xd8] sm:$0xf] %v796
        %861 = vst [vmem:[%s238 + $0xdc] sm:$0xf] %v797
        %862 = vst [vmem:[%s238 + $0xe0] sm:$0xf] %v798
        %863 = vst [vmem:[%s238 + $0xe4] sm:$0xf] %v799
        %864 = vst [vmem:[%s238 + $0xe8] sm:$0xf] %v800
        %865 = vst [vmem:[%s238 + $0xec] sm:$0xf] %v801
        %866 = vst [vmem:[%s238 + $0xf0] sm:$0xf] %v802
        %867 = vst [vmem:[%s238 + $0xf4] sm:$0xf] %v803
        %868 = vst [vmem:[%s238 + $0xf8] sm:$0xf] %v804
        %869 = vst [vmem:[%s238 + $0xfc] sm:$0xf] %v805
        %v870 = vunpack.c.l.bf16 %v742
        %v871 = vunpack.c.l.bf16 %v743
        %v872 = vunpack.c.l.bf16 %v744
        %v873 = vunpack.c.l.bf16 %v745
        %v874 = vunpack.c.l.bf16 %v746
        %v875 = vunpack.c.l.bf16 %v747
        %v876 = vunpack.c.l.bf16 %v748
        %v877 = vunpack.c.l.bf16 %v749
        %v878 = vunpack.c.l.bf16 %v750
        %v879 = vunpack.c.l.bf16 %v751
        %v880 = vunpack.c.l.bf16 %v752
        %v881 = vunpack.c.l.bf16 %v753
        %v882 = vunpack.c.l.bf16 %v754
        %v883 = vunpack.c.l.bf16 %v755
        %v884 = vunpack.c.l.bf16 %v756
        %v885 = vunpack.c.l.bf16 %v757
        %v886 = vunpack.c.l.bf16 %v758
        %v887 = vunpack.c.l.bf16 %v759
        %v888 = vunpack.c.l.bf16 %v760
        %v889 = vunpack.c.l.bf16 %v761
        %v890 = vunpack.c.l.bf16 %v762
        %v891 = vunpack.c.l.bf16 %v763
        %v892 = vunpack.c.l.bf16 %v764
        %v893 = vunpack.c.l.bf16 %v765
        %v894 = vunpack.c.l.bf16 %v766
        %v895 = vunpack.c.l.bf16 %v767
        %v896 = vunpack.c.l.bf16 %v768
        %v897 = vunpack.c.l.bf16 %v769
        %v898 = vunpack.c.l.bf16 %v770
        %v899 = vunpack.c.l.bf16 %v771
        %v900 = vunpack.c.l.bf16 %v772
        %v901 = vunpack.c.l.bf16 %v773
        %v902 = vunpack.c.l.bf16 %v774
        %v903 = vunpack.c.l.bf16 %v775
        %v904 = vunpack.c.l.bf16 %v776
        %v905 = vunpack.c.l.bf16 %v777
        %v906 = vunpack.c.l.bf16 %v778
        %v907 = vunpack.c.l.bf16 %v779
        %v908 = vunpack.c.l.bf16 %v780
        %v909 = vunpack.c.l.bf16 %v781
        %v910 = vunpack.c.l.bf16 %v782
        %v911 = vunpack.c.l.bf16 %v783
        %v912 = vunpack.c.l.bf16 %v784
        %v913 = vunpack.c.l.bf16 %v785
        %v914 = vunpack.c.l.bf16 %v786
        %v915 = vunpack.c.l.bf16 %v787
        %v916 = vunpack.c.l.bf16 %v788
        %v917 = vunpack.c.l.bf16 %v789
        %v918 = vunpack.c.l.bf16 %v790
        %v919 = vunpack.c.l.bf16 %v791
        %v920 = vunpack.c.l.bf16 %v792
        %v921 = vunpack.c.l.bf16 %v793
        %v922 = vunpack.c.l.bf16 %v794
        %v923 = vunpack.c.l.bf16 %v795
        %v924 = vunpack.c.l.bf16 %v796
        %v925 = vunpack.c.l.bf16 %v797
        %v926 = vunpack.c.l.bf16 %v798
        %v927 = vunpack.c.l.bf16 %v799
        %v928 = vunpack.c.l.bf16 %v800
        %v929 = vunpack.c.l.bf16 %v801
        %v930 = vunpack.c.l.bf16 %v802
        %v931 = vunpack.c.l.bf16 %v803
        %v932 = vunpack.c.l.bf16 %v804
        %v933 = vunpack.c.l.bf16 %v805
        %v934 = vadd.f32 %v870, %v871
        %v935 = vadd.f32 %v934, %v872
        %v936 = vadd.f32 %v935, %v873
        %v937 = vadd.f32 %v936, %v874
        %v938 = vadd.f32 %v937, %v875
        %v939 = vadd.f32 %v938, %v876
        %v940 = vadd.f32 %v939, %v877
        %v941 = vadd.f32 %v940, %v878
        %v942 = vadd.f32 %v941, %v879
        %v943 = vadd.f32 %v942, %v880
        %v944 = vadd.f32 %v943, %v881
        %v945 = vadd.f32 %v944, %v882
        %v946 = vadd.f32 %v945, %v883
        %v947 = vadd.f32 %v946, %v884
        %v948 = vadd.f32 %v947, %v885
        %v949 = vadd.f32 %v948, %v886
        %v950 = vadd.f32 %v949, %v887
        %v951 = vadd.f32 %v950, %v888
        %v952 = vadd.f32 %v951, %v889
        %v953 = vadd.f32 %v952, %v890
        %v954 = vadd.f32 %v953, %v891
        %v955 = vadd.f32 %v954, %v892
        %v956 = vadd.f32 %v955, %v893
        %v957 = vadd.f32 %v956, %v894
        %v958 = vadd.f32 %v957, %v895
        %v959 = vadd.f32 %v958, %v896
        %v960 = vadd.f32 %v959, %v897
        %v961 = vadd.f32 %v960, %v898
        %v962 = vadd.f32 %v961, %v899
        %v963 = vadd.f32 %v962, %v900
        %v964 = vadd.f32 %v963, %v901
        %v965 = vadd.f32 %v964, %v902
        %v966 = vadd.f32 %v965, %v903
        %v967 = vadd.f32 %v966, %v904
        %v968 = vadd.f32 %v967, %v905
        %v969 = vadd.f32 %v968, %v906
        %v970 = vadd.f32 %v969, %v907
        %v971 = vadd.f32 %v970, %v908
        %v972 = vadd.f32 %v971, %v909
        %v973 = vadd.f32 %v972, %v910
        %v974 = vadd.f32 %v973, %v911
        %v975 = vadd.f32 %v974, %v912
        %v976 = vadd.f32 %v975, %v913
        %v977 = vadd.f32 %v976, %v914
        %v978 = vadd.f32 %v977, %v915
        %v979 = vadd.f32 %v978, %v916
        %v980 = vadd.f32 %v979, %v917
        %v981 = vadd.f32 %v980, %v918
        %v982 = vadd.f32 %v981, %v919
        %v983 = vadd.f32 %v982, %v920
        %v984 = vadd.f32 %v983, %v921
        %v985 = vadd.f32 %v984, %v922
        %v986 = vadd.f32 %v985, %v923
        %v987 = vadd.f32 %v986, %v924
        %v988 = vadd.f32 %v987, %v925
        %v989 = vadd.f32 %v988, %v926
        %v990 = vadd.f32 %v989, %v927
        %v991 = vadd.f32 %v990, %v928
        %v992 = vadd.f32 %v991, %v929
        %v993 = vadd.f32 %v992, %v930
        %v994 = vadd.f32 %v993, %v931
        %v995 = vadd.f32 %v994, %v932
        %v996 = vadd.f32 %v995, %v933
        %v997 = vrot.slane %v996, 4
        %v998 = vadd.f32 %v996, %v997
        %v999 = vrot.slane %v998, 2
        %v1000 = vadd.f32 %v998, %v999
        %v1001 = vrot.slane %v1000, 1
        %v1002 = vadd.f32 %v1000, %v1001
        %1003 = vst [vmem:[%s244] sm:$0x1] %v1002
        %v1004 = vmul.f32 %v870, %v870
        %v1005 = vmul.f32 %v871, %v871
        %v1006 = vmul.f32 %v872, %v872
        %v1007 = vmul.f32 %v873, %v873
        %v1008 = vmul.f32 %v874, %v874
        %v1009 = vmul.f32 %v875, %v875
        %v1010 = vmul.f32 %v876, %v876
        %v1011 = vmul.f32 %v877, %v877
        %v1012 = vmul.f32 %v878, %v878
        %v1013 = vmul.f32 %v879, %v879
        %v1014 = vmul.f32 %v880, %v880
        %v1015 = vmul.f32 %v881, %v881
        %v1016 = vmul.f32 %v882, %v882
        %v1017 = vmul.f32 %v883, %v883
        %v1018 = vmul.f32 %v884, %v884
        %v1019 = vmul.f32 %v885, %v885
        %v1020 = vmul.f32 %v886, %v886
        %v1021 = vmul.f32 %v887, %v887
        %v1022 = vmul.f32 %v888, %v888
        %v1023 = vmul.f32 %v889, %v889
        %v1024 = vmul.f32 %v890, %v890
        %v1025 = vmul.f32 %v891, %v891
        %v1026 = vmul.f32 %v892, %v892
        %v1027 = vmul.f32 %v893, %v893
        %v1028 = vmul.f32 %v894, %v894
        %v1029 = vmul.f32 %v895, %v895
        %v1030 = vmul.f32 %v896, %v896
        %v1031 = vmul.f32 %v897, %v897
        %v1032 = vmul.f32 %v898, %v898
        %v1033 = vmul.f32 %v899, %v899
        %v1034 = vmul.f32 %v900, %v900
        %v1035 = vmul.f32 %v901, %v901
        %v1036 = vmul.f32 %v902, %v902
        %v1037 = vmul.f32 %v903, %v903
        %v1038 = vmul.f32 %v904, %v904
        %v1039 = vmul.f32 %v905, %v905
        %v1040 = vmul.f32 %v906, %v906
        %v1041 = vmul.f32 %v907, %v907
        %v1042 = vmul.f32 %v908, %v908
        %v1043 = vmul.f32 %v909, %v909
        %v1044 = vmul.f32 %v910, %v910
        %v1045 = vmul.f32 %v911, %v911
        %v1046 = vmul.f32 %v912, %v912
        %v1047 = vmul.f32 %v913, %v913
        %v1048 = vmul.f32 %v914, %v914
        %v1049 = vmul.f32 %v915, %v915
        %v1050 = vmul.f32 %v916, %v916
        %v1051 = vmul.f32 %v917, %v917
        %v1052 = vmul.f32 %v918, %v918
        %v1053 = vmul.f32 %v919, %v919
        %v1054 = vmul.f32 %v920, %v920
        %v1055 = vmul.f32 %v921, %v921
        %v1056 = vmul.f32 %v922, %v922
        %v1057 = vmul.f32 %v923, %v923
        %v1058 = vmul.f32 %v924, %v924
        %v1059 = vmul.f32 %v925, %v925
        %v1060 = vmul.f32 %v926, %v926
        %v1061 = vmul.f32 %v927, %v927
        %v1062 = vmul.f32 %v928, %v928
        %v1063 = vmul.f32 %v929, %v929
        %v1064 = vmul.f32 %v930, %v930
        %v1065 = vmul.f32 %v931, %v931
        %v1066 = vmul.f32 %v932, %v932
        %v1067 = vmul.f32 %v933, %v933
        %v1068 = vadd.f32 %v1004, %v1005
        %v1069 = vadd.f32 %v1068, %v1006
        %v1070 = vadd.f32 %v1069, %v1007
        %v1071 = vadd.f32 %v1070, %v1008
        %v1072 = vadd.f32 %v1071, %v1009
        %v1073 = vadd.f32 %v1072, %v1010
        %v1074 = vadd.f32 %v1073, %v1011
        %v1075 = vadd.f32 %v1074, %v1012
        %v1076 = vadd.f32 %v1075, %v1013
        %v1077 = vadd.f32 %v1076, %v1014
        %v1078 = vadd.f32 %v1077, %v1015
        %v1079 = vadd.f32 %v1078, %v1016
        %v1080 = vadd.f32 %v1079, %v1017
        %v1081 = vadd.f32 %v1080, %v1018
        %v1082 = vadd.f32 %v1081, %v1019
        %v1083 = vadd.f32 %v1082, %v1020
        %v1084 = vadd.f32 %v1083, %v1021
        %v1085 = vadd.f32 %v1084, %v1022
        %v1086 = vadd.f32 %v1085, %v1023
        %v1087 = vadd.f32 %v1086, %v1024
        %v1088 = vadd.f32 %v1087, %v1025
        %v1089 = vadd.f32 %v1088, %v1026
        %v1090 = vadd.f32 %v1089, %v1027
        %v1091 = vadd.f32 %v1090, %v1028
        %v1092 = vadd.f32 %v1091, %v1029
        %v1093 = vadd.f32 %v1092, %v1030
        %v1094 = vadd.f32 %v1093, %v1031
        %v1095 = vadd.f32 %v1094, %v1032
        %v1096 = vadd.f32 %v1095, %v1033
        %v1097 = vadd.f32 %v1096, %v1034
        %v1098 = vadd.f32 %v1097, %v1035
        %v1099 = vadd.f32 %v1098, %v1036
        %v1100 = vadd.f32 %v1099, %v1037
        %v1101 = vadd.f32 %v1100, %v1038
        %v1102 = vadd.f32 %v1101, %v1039
        %v1103 = vadd.f32 %v1102, %v1040
        %v1104 = vadd.f32 %v1103, %v1041
        %v1105 = vadd.f32 %v1104, %v1042
        %v1106 = vadd.f32 %v1105, %v1043
        %v1107 = vadd.f32 %v1106, %v1044
        %v1108 = vadd.f32 %v1107, %v1045
        %v1109 = vadd.f32 %v1108, %v1046
        %v1110 = vadd.f32 %v1109, %v1047
        %v1111 = vadd.f32 %v1110, %v1048
        %v1112 = vadd.f32 %v1111, %v1049
        %v1113 = vadd.f32 %v1112, %v1050
        %v1114 = vadd.f32 %v1113, %v1051
        %v1115 = vadd.f32 %v1114, %v1052
        %v1116 = vadd.f32 %v1115, %v1053
        %v1117 = vadd.f32 %v1116, %v1054
        %v1118 = vadd.f32 %v1117, %v1055
        %v1119 = vadd.f32 %v1118, %v1056
        %v1120 = vadd.f32 %v1119, %v1057
        %v1121 = vadd.f32 %v1120, %v1058
        %v1122 = vadd.f32 %v1121, %v1059
        %v1123 = vadd.f32 %v1122, %v1060
        %v1124 = vadd.f32 %v1123, %v1061
        %v1125 = vadd.f32 %v1124, %v1062
        %v1126 = vadd.f32 %v1125, %v1063
        %v1127 = vadd.f32 %v1126, %v1064
        %v1128 = vadd.f32 %v1127, %v1065
        %v1129 = vadd.f32 %v1128, %v1066
        %v1130 = vadd.f32 %v1129, %v1067
        %v1131 = vrot.slane %v1130, 4
        %v1132 = vadd.f32 %v1130, %v1131
        %v1133 = vrot.slane %v1132, 2
        %v1134 = vadd.f32 %v1132, %v1133
        %v1135 = vrot.slane %v1134, 1
        %v1136 = vadd.f32 %v1134, %v1135
        %1137 = vst [vmem:[%s250] sm:$0x1] %v1136
        %s1138 = sand.u32 %s81, 1
        %s1139 = scalar_lea.sflag [#allocation4], %s1138
        %s1140 = sand.u32 %s81, 1
        %s1141 = smul.addr %s1140, 256
        %s1142 = scalar_lea.vmem [#allocation7], %s1141
        %s1143 = sand.u32 %s26, 1
        %s1144 = scalar_lea.sflag [#allocation9], %s1143
        %s1145 = sand.u32 %s107, 1
        %s1146 = scalar_lea.vmem [#allocation8], %s1145
        %s1147 = sand.u32 %s26, 1
        %s1148 = scalar_lea.sflag [#allocation9], %s1147
        %s1149 = sand.u32 %s133, 1
        %s1150 = scalar_lea.vmem [#allocation10], %s1149
        // Predicated region
        $region37: #{tpu_custom_call.1} parent=27 // pred_check
          %p1151 = pneg %p91
        $region38: #{tpu_custom_call.1} parent=27 // pred_check_branch
          %1153 = sbr.rel (%p1151) target = $region40
        $region39: #{tpu_custom_call.1} parent=27 // pred_region
          %s1154 = smul.u32 64, %s26
          %1156 = vsyncadd %s1139, 0
          %s1157 = smul.addr %s1154, 4
          %s1158 = scalar_lea.hbm %s2, %s1157
          %s1159 = sshll.u32 %s1142, 4
          %s1160 = int_to_ptr.vmem [resolvable:$true] %s1159
          %s1161 = sshll.u32 %s1158, 4
          %s1162 = int_to_ptr.hbm [resolvable:$true] %s1161
          %1167 = dma.vmem_to_hbm [thread:$0]  %s1160, 4096, %s1162, %s1139, 64, 64, 4
        $region40: #{tpu_custom_call.1} parent=27 // pred_fallthru
          _
        // Predicated region
        $region41: #{tpu_custom_call.1} parent=27 // pred_check
          %p1168 = pneg %p117
        $region42: #{tpu_custom_call.1} parent=27 // pred_check_branch
          %1170 = sbr.rel (%p1168) target = $region44
        $region43: #{tpu_custom_call.1} parent=27 // pred_region
          %1172 = vsyncadd %s1144, 0
          %s1173 = scalar_lea.hbm %s3, %s26
          %s1175 = sshll.u32 %s1146, 4
          %s1176 = int_to_ptr.vmem [resolvable:$true] %s1175
          %s1177 = sshll.u32 %s1173, 4
          %s1178 = int_to_ptr.hbm [resolvable:$true] %s1177
          %1180 = dma.vmem_to_hbm [thread:$0]  %s1176, 16, %s1178, %s1144
        $region44: #{tpu_custom_call.1} parent=27 // pred_fallthru
          _
        // Predicated region
        $region45: #{tpu_custom_call.1} parent=27 // pred_check
          %p1181 = pneg %p143
        $region46: #{tpu_custom_call.1} parent=27 // pred_check_branch
          %1183 = sbr.rel (%p1181) target = $region48
        $region47: #{tpu_custom_call.1} parent=27 // pred_region
          %1185 = vsyncadd %s1148, 0
          %s1186 = scalar_lea.hbm %s4, %s26
          %s1188 = sshll.u32 %s1150, 4
          %s1189 = int_to_ptr.vmem [resolvable:$true] %s1188
          %s1190 = sshll.u32 %s1186, 4
          %s1191 = int_to_ptr.hbm [resolvable:$true] %s1190
          %1193 = dma.vmem_to_hbm [thread:$0]  %s1189, 16, %s1191, %s1148
        $region48: #{tpu_custom_call.1} parent=27 // pred_fallthru
          _
      $region28: #{tpu_custom_call.1} parent=5 // pred_fallthru
        _
      %p1194 = scmp.le.s32.totalorder 2, %s21
      // Predicated region
      $region49: #{tpu_custom_call.1} parent=5 // pred_check
        %p1195 = pneg %p1194
      $region50: #{tpu_custom_call.1} parent=5 // pred_check_branch
        %1197 = sbr.rel (%p1195) target = $region52
      $region51: #{tpu_custom_call.1} parent=5 // pred_region
        %s1198 = ssub.s32 %s21, 2
        // Predicated region
        $region53: #{tpu_custom_call.1} parent=51 // pred_check
          %p1199 = pneg %p97
        $region54: #{tpu_custom_call.1} parent=51 // pred_check_branch
          %1201 = sbr.rel (%p1199) target = $region56
        $region55: #{tpu_custom_call.1} parent=51 // pred_region
          %s1202 = sand.u32 %s82, 1
          %s1203 = scalar_lea.sflag [#allocation4], %s1202
          %s1204 = sand.u32 %s82, 1
          %s1205 = smul.addr %s1204, 256
          %s1206 = scalar_lea.vmem [#allocation7], %s1205
          %1208 = dma.done %s1203, 4096
        $region56: #{tpu_custom_call.1} parent=51 // pred_fallthru
          _
        // Predicated region
        $region57: #{tpu_custom_call.1} parent=51 // pred_check
          %p1209 = pneg %p123
        $region58: #{tpu_custom_call.1} parent=51 // pred_check_branch
          %1211 = sbr.rel (%p1209) target = $region60
        $region59: #{tpu_custom_call.1} parent=51 // pred_region
          %s1212 = sand.u32 %s27, 1
          %s1213 = scalar_lea.sflag [#allocation9], %s1212
          %s1214 = sand.u32 %s108, 1
          %s1215 = scalar_lea.vmem [#allocation8], %s1214
          %1217 = dma.done %s1213, 16
        $region60: #{tpu_custom_call.1} parent=51 // pred_fallthru
          _
        // Predicated region
        $region61: #{tpu_custom_call.1} parent=51 // pred_check
          %p1218 = pneg %p149
        $region62: #{tpu_custom_call.1} parent=51 // pred_check_branch
          %1220 = sbr.rel (%p1218) target = $region64
        $region63: #{tpu_custom_call.1} parent=51 // pred_region
          %s1221 = sand.u32 %s27, 1
          %s1222 = scalar_lea.sflag [#allocation9], %s1221
          %s1223 = sand.u32 %s134, 1
          %s1224 = scalar_lea.vmem [#allocation10], %s1223
          %1226 = dma.done %s1222, 16
        $region64: #{tpu_custom_call.1} parent=51 // pred_fallthru
          _
      $region52: #{tpu_custom_call.1} parent=5 // pred_fallthru
        _
    $region6: #{tpu_custom_call.1} parent=1 // loop_footer
      %s25 = sadd.s32 1, %s21
    $region7: #{tpu_custom_call.1} parent=1 // loop_footer_branch
      %20 = sbr.rel target = $region3
    $region8: #{tpu_custom_call.1} parent=1 // loop_exit
      _
    %1227 = vsyncpa [#allocation3], 1
    %s1228 = scalar_lea.sflag [#allocation3], 1
    %1229 = vsyncpa %s1228, 1
    %1230 = vsyncpa [#allocation6], 1
    %1231 = vsyncpa [#allocation4], 1
    %s1232 = scalar_lea.sflag [#allocation4], 1
    %1233 = vsyncpa %s1232, 1
    %1234 = vsyncpa [#allocation9], 1
    %s1235 = scalar_lea.sflag [#allocation9], 1
    %1236 = vsyncpa %s1235, 1

</llo_original>
